<compile_context>
chip_gen: v7x
topology: tpu7x:2x2x1
jax: 0.10.0
libtpu: 0.0.40
codegen_flags: <defaults>
</compile_context>

<pallas_src>
import jax
import jax.numpy as jnp
from jax.experimental import pallas as pl
from jax.experimental.pallas import tpu as pltpu

LANE = 128  # lane-dense hidden width; exactly one MXU pass on v5e


def _round_up(n, m):
    return ((n + m - 1) // m) * m


def _leaky_relu(v, negative_slope=0.01):
    # Exact equivalent of where(v > 0, v, a*v) for 0 < a < 1.
    return jnp.maximum(v, negative_slope * v)


def mlp_kernel(x_ref,
               w1_ref, b1_ref,
               w2_ref, b2_ref,
               w20_ref, b20_ref,
               w3_ref, b3_ref,
               o_ref):
    # x arrives f32; cast to bf16 in-register for the MXU.  All accumulation
    # in f32, activations in f32.
    xb = x_ref[...].astype(jnp.bfloat16)

    h = jnp.dot(xb, w1_ref[...],
                preferred_element_type=jnp.float32) + b1_ref[...]
    h = _leaky_relu(h)

    h = jnp.dot(h.astype(jnp.bfloat16), w2_ref[...],
                preferred_element_type=jnp.float32) + b2_ref[...]
    h = _leaky_relu(h)

    h = jnp.dot(h.astype(jnp.bfloat16), w20_ref[...],
                preferred_element_type=jnp.float32) + b20_ref[...]
    h = _leaky_relu(h)

    h = jnp.dot(h.astype(jnp.bfloat16), w3_ref[...],
                preferred_element_type=jnp.float32) + b3_ref[...]
    o_ref[...] = h.astype(o_ref.dtype)   # true out_dim width, single pass


def net_forward(x, params, *, block_b=1024):
    """x: (B, in_dim) float32; params: (in,out) weights + (1,out) biases."""
    B, in_dim = x.shape
    out_dim = params["w3"].shape[1]

    # Lane-dense padded hidden widths (multiples of 128).  fc3's output width
    # is NOT padded: the kernel writes only the real out_dim columns.
    p1 = _round_up(params["w1"].shape[1], LANE)   # fc1 out
    p2 = _round_up(params["w2"].shape[1], LANE)   # fc2 / fc20 out

    def pad_w(w, rows, cols):
        z = jnp.zeros((rows, cols), jnp.bfloat16)
        return z.at[:w.shape[0], :w.shape[1]].set(w.astype(jnp.bfloat16))

    def pad_b(b, cols):
        z = jnp.zeros((1, cols), jnp.float32)
        return z.at[:, :b.shape[1]].set(b.astype(jnp.float32))

    w1 = pad_w(params["w1"], in_dim, p1);  b1 = pad_b(params["b1"], p1)
    w2 = pad_w(params["w2"], p1, p2);      b2 = pad_b(params["b2"], p2)
    w20 = pad_w(params["w20"], p2, p2);    b20 = pad_b(params["b20"], p2)
    w3 = pad_w(params["w3"], p2, out_dim); b3 = pad_b(params["b3"], out_dim)

    # ---- batch tiling (no wrapper-side padding of x) ------------------------
    if B <= block_b:
        tb = B                        # block == full dim -> always legal
        if B >= 16 and B % 16 == 0:
            tb = B // 2               # >=2 grid steps so v7x megacore uses both TCs
    else:
        tb = block_b                  # multiple of 8 -> legal sublane tiling

    # VMEM working-set budget: single-copy weights + double-buffered x/out
    # tiles + f32/bf16 intermediates.  Keep <= ~48 MiB (safe on v7x's 64 MiB
    # as well as v5e/v6e's 128 MiB).
    w_bytes = 2 * (in_dim * p1 + p1 * p2 + p2 * p2 + p2 * out_dim)
    b_bytes = 4 * (p1 + 2 * p2 + out_dim)

    def footprint(t):
        return (w_bytes + b_bytes
                + 2 * t * in_dim * 4       # x tile (f32, double-buffered)
                + 2 * t * out_dim * 4      # out tile (f32, double-buffered)
                + t * (p1 + 2 * p2) * 8)   # f32 + bf16 intermediates (rough)

    BUDGET = 48 * 1024 * 1024
    while footprint(tb) > BUDGET and tb > 8:
        tb = max(8, ((tb // 2) + 7) // 8 * 8)
    # TODO(synk): for in_dim >~ 4-8K, w1 alone can exceed the v7x VMEM budget;
    # that configuration needs a K-tiled fc1 (extra 'arbitrary' grid axis with
    # an f32 accumulator scratch) instead of a whole-resident w1.

    n_tiles = pl.cdiv(B, tb)
    vmem_limit = int(min(60 * 1024 * 1024,
                         max(32 * 1024 * 1024, footprint(tb) * 5 // 4)))

    # Advisory cost for XLA scheduling around the custom call.
    w_elems = in_dim * p1 + p1 * p2 + p2 * p2 + p2 * out_dim
    flops = 2 * B * w_elems
    bytes_accessed = (B * in_dim * 4      # x (f32, read once)
                      + w_bytes + b_bytes
                      + B * out_dim * 4)  # output (f32, true width)

    resident = pl.BlockSpec(memory_space=pltpu.MemorySpace.VMEM)  # single copy

    out = pl.pallas_call(
        mlp_kernel,
        out_shape=jax.ShapeDtypeStruct((B, out_dim), jnp.float32),
        grid=(n_tiles,),
        in_specs=[
            pl.BlockSpec((tb, in_dim), lambda i: (i, 0)),  # x: batch-tiled
            resident, resident,    # w1, b1
            resident, resident,    # w2, b2
            resident, resident,    # w20, b20
            resident, resident,    # w3, b3
        ],
        out_specs=pl.BlockSpec((tb, out_dim), lambda i: (i, 0)),
        compiler_params=pltpu.CompilerParams(
            dimension_semantics=("parallel",),   # v7x: shard tiles over both TCs
            vmem_limit_bytes=vmem_limit,
        ),
        cost_estimate=pl.CostEstimate(
            flops=flops, transcendentals=0, bytes_accessed=bytes_accessed),
    )(x, w1, b1, w2, b2, w20, b20, w3, b3)

    return out


def init_params(key, in_dim, out_dim=2):
    """Deterministic init matching the layer shapes of Net.__init__."""
    dim = max(in_dim, out_dim * 8 * 2)
    sizes = [(in_dim, dim // 4),      # fc1
             (dim // 4, dim // 8),    # fc2
             (dim // 8, dim // 8),    # fc20
             (dim // 8, out_dim)]     # fc3
    names = ["1", "2", "20", "3"]
    params = {}
    for name, (fan_in, fan_out) in zip(names, sizes):
        key, kw, kb = jax.random.split(key, 3)
        bound = 1.0 / jnp.sqrt(fan_in)  # same scale as torch.nn.Linear default
        params[f"w{name}"] = jax.random.uniform(
            kw, (fan_in, fan_out), jnp.float32, -bound, bound)
        params[f"b{name}"] = jax.random.uniform(
            kb, (1, fan_out), jnp.float32, -bound, bound)
    return params


def reference_forward(x, params):
    """Plain-JAX reference mirroring the kernel's bf16-in / f32-accumulate path.

    NOTE: the kernel (and this reference) run the matmuls in bf16 with f32
    accumulation; results deviate slightly from an all-f32 PyTorch Net.
    """
    def lin(h, w, b):
        return jnp.dot(h.astype(jnp.bfloat16), w.astype(jnp.bfloat16),
                       preferred_element_type=jnp.float32) + b
    h = _leaky_relu(lin(x, params["w1"], params["b1"]))
    h = _leaky_relu(lin(h, params["w2"], params["b2"]))
    h = _leaky_relu(lin(h, params["w20"], params["b20"]))
    return lin(h, params["w3"], params["b3"])


if __name__ == "__main__":
    in_dim, out_dim, batch = 32, 2, 8

    key = jax.random.PRNGKey(0)
    key, kx = jax.random.split(key)
    x = jax.random.normal(kx, (batch, in_dim), jnp.float32)
    params = init_params(key, in_dim, out_dim)

    out = net_forward(x, params)
    out = jax.block_until_ready(out)

    ref = reference_forward(x, params)
    assert out.shape == (batch, out_dim)
    assert jnp.allclose(out, ref, atol=2e-2, rtol=2e-2)

    print("KERNEL_OK")
</pallas_src>

<mosaic_0001>
module attributes {stable_mosaic.version = 11 : i64} {
  func.func @mlp_kernel(%arg0: i32, %arg1: memref<8x32xf32, #tpu.memory_space<vmem>>, %arg2: memref<32x128xbf16, #tpu.memory_space<vmem>>, %arg3: memref<1x128xf32, #tpu.memory_space<vmem>>, %arg4: memref<128x128xbf16, #tpu.memory_space<vmem>>, %arg5: memref<1x128xf32, #tpu.memory_space<vmem>>, %arg6: memref<128x128xbf16, #tpu.memory_space<vmem>>, %arg7: memref<1x128xf32, #tpu.memory_space<vmem>>, %arg8: memref<128x2xbf16, #tpu.memory_space<vmem>>, %arg9: memref<1x2xf32, #tpu.memory_space<vmem>>, %arg10: memref<8x2xf32, #tpu.memory_space<vmem>>) attributes {dimension_semantics = [#tpu.dimension_semantics<parallel>], iteration_bounds = array<i64: 1>, scalar_prefetch = 0 : i64, scratch_operands = 0 : i64, tpu.core_type = #tpu.core_type<tc>, window_params = [{transform_indices = @transform_0, window_bounds = array<i64: 8, 32>}, {pipeline_mode = #tpu.pipeline_mode<synchronous>, transform_indices = @transform_1, window_bounds = array<i64: 32, 128>}, {pipeline_mode = #tpu.pipeline_mode<synchronous>, transform_indices = @transform_2, window_bounds = array<i64: 1, 128>}, {pipeline_mode = #tpu.pipeline_mode<synchronous>, transform_indices = @transform_3, window_bounds = array<i64: 128, 128>}, {pipeline_mode = #tpu.pipeline_mode<synchronous>, transform_indices = @transform_4, window_bounds = array<i64: 1, 128>}, {pipeline_mode = #tpu.pipeline_mode<synchronous>, transform_indices = @transform_5, window_bounds = array<i64: 128, 128>}, {pipeline_mode = #tpu.pipeline_mode<synchronous>, transform_indices = @transform_6, window_bounds = array<i64: 1, 128>}, {pipeline_mode = #tpu.pipeline_mode<synchronous>, transform_indices = @transform_7, window_bounds = array<i64: 128, 2>}, {pipeline_mode = #tpu.pipeline_mode<synchronous>, transform_indices = @transform_8, window_bounds = array<i64: 1, 2>}, {transform_indices = @transform_9, window_bounds = array<i64: 8, 2>}]} {
    %c0 = arith.constant 0 : index
    %c0_0 = arith.constant 0 : index
    %0 = vector.load %arg1[%c0, %c0_0] : memref<8x32xf32, #tpu.memory_space<vmem>>, vector<8x32xf32>
    %1 = arith.truncf %0 : vector<8x32xf32> to vector<8x32xbf16>
    %c0_1 = arith.constant 0 : index
    %c0_2 = arith.constant 0 : index
    %2 = vector.load %arg2[%c0_1, %c0_2] : memref<32x128xbf16, #tpu.memory_space<vmem>>, vector<32x128xbf16>
    %cst = arith.constant dense<0.000000e+00> : vector<8x128xf32>
    %3 = tpu.matmul %1, %2, %cst {dimension_numbers = #tpu.dot_dimension_numbers<[1], [0], [0], [1], [0, 0, 1, 1], [], []>} : vector<8x32xbf16>, vector<32x128xbf16>, vector<8x128xf32> -> vector<8x128xf32>
    %c0_3 = arith.constant 0 : index
    %c0_4 = arith.constant 0 : index
    %4 = vector.load %arg3[%c0_3, %c0_4] : memref<1x128xf32, #tpu.memory_space<vmem>>, vector<1x128xf32>
    %5 = vector.broadcast %4 : vector<1x128xf32> to vector<8x128xf32>
    %6 = arith.addf %3, %5 : vector<8x128xf32>
    %cst_5 = arith.constant 0.00999999977 : f32
    %7 = vector.broadcast %cst_5 : f32 to vector<8x128xf32>
    %8 = arith.mulf %7, %6 : vector<8x128xf32>
    %9 = arith.maximumf %6, %8 : vector<8x128xf32>
    %10 = arith.truncf %9 : vector<8x128xf32> to vector<8x128xbf16>
    %c0_6 = arith.constant 0 : index
    %c0_7 = arith.constant 0 : index
    %11 = vector.load %arg4[%c0_6, %c0_7] : memref<128x128xbf16, #tpu.memory_space<vmem>>, vector<128x128xbf16>
    %cst_8 = arith.constant dense<0.000000e+00> : vector<8x128xf32>
    %12 = tpu.matmul %10, %11, %cst_8 {dimension_numbers = #tpu.dot_dimension_numbers<[1], [0], [0], [1], [0, 0, 1, 1], [], []>} : vector<8x128xbf16>, vector<128x128xbf16>, vector<8x128xf32> -> vector<8x128xf32>
    %c0_9 = arith.constant 0 : index
    %c0_10 = arith.constant 0 : index
    %13 = vector.load %arg5[%c0_9, %c0_10] : memref<1x128xf32, #tpu.memory_space<vmem>>, vector<1x128xf32>
    %14 = vector.broadcast %13 : vector<1x128xf32> to vector<8x128xf32>
    %15 = arith.addf %12, %14 : vector<8x128xf32>
    %cst_11 = arith.constant 0.00999999977 : f32
    %16 = vector.broadcast %cst_11 : f32 to vector<8x128xf32>
    %17 = arith.mulf %16, %15 : vector<8x128xf32>
    %18 = arith.maximumf %15, %17 : vector<8x128xf32>
    %19 = arith.truncf %18 : vector<8x128xf32> to vector<8x128xbf16>
    %c0_12 = arith.constant 0 : index
    %c0_13 = arith.constant 0 : index
    %20 = vector.load %arg6[%c0_12, %c0_13] : memref<128x128xbf16, #tpu.memory_space<vmem>>, vector<128x128xbf16>
    %cst_14 = arith.constant dense<0.000000e+00> : vector<8x128xf32>
    %21 = tpu.matmul %19, %20, %cst_14 {dimension_numbers = #tpu.dot_dimension_numbers<[1], [0], [0], [1], [0, 0, 1, 1], [], []>} : vector<8x128xbf16>, vector<128x128xbf16>, vector<8x128xf32> -> vector<8x128xf32>
    %c0_15 = arith.constant 0 : index
    %c0_16 = arith.constant 0 : index
    %22 = vector.load %arg7[%c0_15, %c0_16] : memref<1x128xf32, #tpu.memory_space<vmem>>, vector<1x128xf32>
    %23 = vector.broadcast %22 : vector<1x128xf32> to vector<8x128xf32>
    %24 = arith.addf %21, %23 : vector<8x128xf32>
    %cst_17 = arith.constant 0.00999999977 : f32
    %25 = vector.broadcast %cst_17 : f32 to vector<8x128xf32>
    %26 = arith.mulf %25, %24 : vector<8x128xf32>
    %27 = arith.maximumf %24, %26 : vector<8x128xf32>
    %28 = arith.truncf %27 : vector<8x128xf32> to vector<8x128xbf16>
    %c0_18 = arith.constant 0 : index
    %c0_19 = arith.constant 0 : index
    %29 = vector.load %arg8[%c0_18, %c0_19] : memref<128x2xbf16, #tpu.memory_space<vmem>>, vector<128x2xbf16>
    %cst_20 = arith.constant dense<0.000000e+00> : vector<8x2xf32>
    %30 = tpu.matmul %28, %29, %cst_20 {dimension_numbers = #tpu.dot_dimension_numbers<[1], [0], [0], [1], [0, 0, 1, 1], [], []>} : vector<8x128xbf16>, vector<128x2xbf16>, vector<8x2xf32> -> vector<8x2xf32>
    %c0_21 = arith.constant 0 : index
    %c0_22 = arith.constant 0 : index
    %31 = vector.load %arg9[%c0_21, %c0_22] : memref<1x2xf32, #tpu.memory_space<vmem>>, vector<1x2xf32>
    %32 = vector.broadcast %31 : vector<1x2xf32> to vector<8x2xf32>
    %33 = arith.addf %30, %32 : vector<8x2xf32>
    %c0_23 = arith.constant 0 : index
    %c0_24 = arith.constant 0 : index
    %34 = vector.load %arg10[%c0_23, %c0_24] : memref<8x2xf32, #tpu.memory_space<vmem>>, vector<8x2xf32>
    tpu.vector_store %arg10[%c0_23, %c0_24], %33 {strides = array<i32>} : memref<8x2xf32, #tpu.memory_space<vmem>>, vector<8x2xf32>,
    return
  }
  func.func @transform_0(%arg0: i32) -> (i32, i32) {
    %c0_i32 = arith.constant 0 : i32
    %c0_i32_0 = arith.constant 0 : i32
    return %arg0, %c0_i32 : i32, i32
  }
  func.func @transform_1(%arg0: i32) -> (i32, i32) {
    %c0_i32 = arith.constant 0 : i32
    %c0_i32_0 = arith.constant 0 : i32
    %c0_i32_1 = arith.constant 0 : i32
    return %c0_i32, %c0_i32_0 : i32, i32
  }
  func.func @transform_2(%arg0: i32) -> (i32, i32) {
    %c0_i32 = arith.constant 0 : i32
    %c0_i32_0 = arith.constant 0 : i32
    %c0_i32_1 = arith.constant 0 : i32
    return %c0_i32, %c0_i32_0 : i32, i32
  }
  func.func @transform_3(%arg0: i32) -> (i32, i32) {
    %c0_i32 = arith.constant 0 : i32
    %c0_i32_0 = arith.constant 0 : i32
    %c0_i32_1 = arith.constant 0 : i32
    return %c0_i32, %c0_i32_0 : i32, i32
  }
  func.func @transform_4(%arg0: i32) -> (i32, i32) {
    %c0_i32 = arith.constant 0 : i32
    %c0_i32_0 = arith.constant 0 : i32
    %c0_i32_1 = arith.constant 0 : i32
    return %c0_i32, %c0_i32_0 : i32, i32
  }
  func.func @transform_5(%arg0: i32) -> (i32, i32) {
    %c0_i32 = arith.constant 0 : i32
    %c0_i32_0 = arith.constant 0 : i32
    %c0_i32_1 = arith.constant 0 : i32
    return %c0_i32, %c0_i32_0 : i32, i32
  }
  func.func @transform_6(%arg0: i32) -> (i32, i32) {
    %c0_i32 = arith.constant 0 : i32
    %c0_i32_0 = arith.constant 0 : i32
    %c0_i32_1 = arith.constant 0 : i32
    return %c0_i32, %c0_i32_0 : i32, i32
  }
  func.func @transform_7(%arg0: i32) -> (i32, i32) {
    %c0_i32 = arith.constant 0 : i32
    %c0_i32_0 = arith.constant 0 : i32
    %c0_i32_1 = arith.constant 0 : i32
    return %c0_i32, %c0_i32_0 : i32, i32
  }
  func.func @transform_8(%arg0: i32) -> (i32, i32) {
    %c0_i32 = arith.constant 0 : i32
    %c0_i32_0 = arith.constant 0 : i32
    %c0_i32_1 = arith.constant 0 : i32
    return %c0_i32, %c0_i32_0 : i32, i32
  }
  func.func @transform_9(%arg0: i32) -> (i32, i32) {
    %c0_i32 = arith.constant 0 : i32
    %c0_i32_0 = arith.constant 0 : i32
    return %arg0, %c0_i32 : i32, i32
  }
}

</mosaic_0001>

<llo_original>
// kernel: tpu_custom_call.1
$region0: #{tpu_custom_call.1}
  #allocation0 [shape = 'u32[]', space=smem, size = 0x4, offset = 0x4, fixed_abs, tag = 'smem constant byte address 0x4 - core index']
  #allocation1 [shape = 'u32[144,128]{1,0:T(1,128)}', space=vmem, size = 0x12000, scoped, tag = 'internal scratch']
  %s0 = inlined_call_operand.vmem [shape: f32[8,32], index: 0, kind: input, shape index: {}]
  %s1 = inlined_call_operand.hbm [shape: bf16[32,128], index: 1, kind: input, shape index: {}]
  %s2 = inlined_call_operand.vmem [shape: f32[1,128], index: 2, kind: input, shape index: {}]
  %s3 = inlined_call_operand.vmem [shape: bf16[128,128], index: 3, kind: input, shape index: {}]
  %s4 = inlined_call_operand.vmem [shape: f32[1,128], index: 4, kind: input, shape index: {}]
  %s5 = inlined_call_operand.hbm [shape: bf16[128,128], index: 5, kind: input, shape index: {}]
  %s6 = inlined_call_operand.vmem [shape: f32[1,128], index: 6, kind: input, shape index: {}]
  %s7 = inlined_call_operand.vmem [shape: bf16[128,2], index: 7, kind: input, shape index: {}]
  %s8 = inlined_call_operand.vmem [shape: f32[1,2], index: 8, kind: input, shape index: {}]
  %s9 = inlined_call_operand.vmem [shape: f32[8,2], index: 9, kind: output, shape index: {}]
  %s10 = sld [smem:[#allocation0]]
  $region54: #{tpu_custom_call.1} parent=0
    _
  %s12 = ssub.s32 1, %s10
  %s13 = scalar_select 0, %s12, %s10
  $region1: #{tpu_custom_call.1} parent=0
    #allocation2 [shape = 'u8[8192]{0}', space=vmem, size = 0x2000, scoped, tag = 'input window, operand 1, single buffered']
    #allocation3 [shape = 's32[1]{0}', space=sflag, size = 0x4, scoped, tag = 'scoped memory for tpu_custom_call.1']
    #allocation4 [shape = 'u8[32768]{0}', space=vmem, size = 0x8000, scoped, tag = 'input window, operand 5, single buffered']
    #allocation5 [shape = 's32[1]{0}', space=sflag, size = 0x4, scoped, tag = 'scoped memory for tpu_custom_call.1']
    %14 = vsyncpa [#allocation3], 0
    %15 = vsyncpa [#allocation5], 0
    // Predicated region
    $region2: #{tpu_custom_call.1} parent=1 // pred_check
      _
    $region3: #{tpu_custom_call.1} parent=1 // pred_check_branch
      %17 = sbr.rel (0) target = $region5
    $region4: #{tpu_custom_call.1} parent=1 // pred_region
      _
    $region5: #{tpu_custom_call.1} parent=1 // pred_fallthru
      _
    // Predicated region
    $region6: #{tpu_custom_call.1} parent=1 // pred_check
      _
    $region7: #{tpu_custom_call.1} parent=1 // pred_check_branch
      %19 = sbr.rel (0) target = $region9
    $region8: #{tpu_custom_call.1} parent=1 // pred_region
      %s21 = ssub.s32 256, 256
      %22 = vsyncadd [#allocation3], %s21
      %s23 = sshll.u32 [#allocation2], 4
      %s24 = int_to_ptr.vmem [resolvable:$true] %s23
      %29 = dma.hbm_to_vmem [thread:$0]  %s1, 256, %s24, [#allocation3], 64, 64, 4
    $region9: #{tpu_custom_call.1} parent=1 // pred_fallthru
      _
    // Predicated region
    $region10: #{tpu_custom_call.1} parent=1 // pred_check
      _
    $region11: #{tpu_custom_call.1} parent=1 // pred_check_branch
      %31 = sbr.rel (0) target = $region13
    $region12: #{tpu_custom_call.1} parent=1 // pred_region
      _
    $region13: #{tpu_custom_call.1} parent=1 // pred_fallthru
      _
    // Predicated region
    $region14: #{tpu_custom_call.1} parent=1 // pred_check
      _
    $region15: #{tpu_custom_call.1} parent=1 // pred_check_branch
      %33 = sbr.rel (0) target = $region17
    $region16: #{tpu_custom_call.1} parent=1 // pred_region
      _
    $region17: #{tpu_custom_call.1} parent=1 // pred_fallthru
      _
    // Predicated region
    $region18: #{tpu_custom_call.1} parent=1 // pred_check
      _
    $region19: #{tpu_custom_call.1} parent=1 // pred_check_branch
      %35 = sbr.rel (0) target = $region21
    $region20: #{tpu_custom_call.1} parent=1 // pred_region
      _
    $region21: #{tpu_custom_call.1} parent=1 // pred_fallthru
      _
    // Predicated region
    $region22: #{tpu_custom_call.1} parent=1 // pred_check
      _
    $region23: #{tpu_custom_call.1} parent=1 // pred_check_branch
      %37 = sbr.rel (0) target = $region25
    $region24: #{tpu_custom_call.1} parent=1 // pred_region
      %s39 = ssub.s32 1024, 1024
      %40 = vsyncadd [#allocation5], %s39
      %s41 = sshll.u32 [#allocation4], 4
      %s42 = int_to_ptr.vmem [resolvable:$true] %s41
      %47 = dma.hbm_to_vmem [thread:$0]  %s5, 1024, %s42, [#allocation5], 64, 64, 4
    $region25: #{tpu_custom_call.1} parent=1 // pred_fallthru
      _
    // Predicated region
    $region26: #{tpu_custom_call.1} parent=1 // pred_check
      _
    $region27: #{tpu_custom_call.1} parent=1 // pred_check_branch
      %49 = sbr.rel (0) target = $region29
    $region28: #{tpu_custom_call.1} parent=1 // pred_region
      _
    $region29: #{tpu_custom_call.1} parent=1 // pred_fallthru
      _
    // Predicated region
    $region30: #{tpu_custom_call.1} parent=1 // pred_check
      _
    $region31: #{tpu_custom_call.1} parent=1 // pred_check_branch
      %51 = sbr.rel (0) target = $region33
    $region32: #{tpu_custom_call.1} parent=1 // pred_region
      _
    $region33: #{tpu_custom_call.1} parent=1 // pred_fallthru
      _
    // Predicated region
    $region34: #{tpu_custom_call.1} parent=1 // pred_check
      _
    $region35: #{tpu_custom_call.1} parent=1 // pred_check_branch
      %53 = sbr.rel (0) target = $region37
    $region36: #{tpu_custom_call.1} parent=1 // pred_region
      _
    $region37: #{tpu_custom_call.1} parent=1 // pred_fallthru
      _
    // Predicated region
    $region38: #{tpu_custom_call.1} parent=1 // pred_check
      _
    $region39: #{tpu_custom_call.1} parent=1 // pred_check_branch
      %55 = sbr.rel (0) target = $region41
    $region40: #{tpu_custom_call.1} parent=1 // pred_region
      %56 = dma.done [#allocation3], 256
    $region41: #{tpu_custom_call.1} parent=1 // pred_fallthru
      _
    // Predicated region
    $region42: #{tpu_custom_call.1} parent=1 // pred_check
      _
    $region43: #{tpu_custom_call.1} parent=1 // pred_check_branch
      %58 = sbr.rel (0) target = $region45
    $region44: #{tpu_custom_call.1} parent=1 // pred_region
      %59 = dma.done [#allocation5], 1024
    $region45: #{tpu_custom_call.1} parent=1 // pred_fallthru
      _
    %v61 = vld [vmem:[%s0] sm:$0xff]
    %v62 = vpack.c.bf16 %v61, %v61
    %v63 = vld [vmem:[#allocation2] sm:$0xf]
    %v64 = vld [vmem:[#allocation2 + $0x4] sm:$0xf]
    %v65 = vld [vmem:[#allocation2 + $0x8] sm:$0xf]
    %v66 = vld [vmem:[#allocation2 + $0xc] sm:$0xf]
    %v67 = vld [vmem:[%s2] sm:$0x1]
    %v69 = vlaneseq
    %v70 = vshrl.u32 %v69, 7
    %v71 = vsub.s32 0, %v70
    %v72 = vrot.slane %v67, %v71
    %v78 = vunpack.c.l.b16 %v63
    %v79 = vunpack.c.l.b16 %v64
    %v80 = vunpack.c.l.b16 %v65
    %v81 = vunpack.c.l.b16 %v66
    %v82 = vpack.c.b16 %v79, %v78
    %v83 = vpack.c.b16 %v81, %v80
    %vm86 = vcmask 261120
    %v88 = vsel %vm86, %v62, 0
    %90 = vmatprep.subr.bf16.mxu0 0
    %91 = vmatpush1.bf16.msra.mxu0 %v82
    %92 = vmatprep.subr.bf16.mxu0 0
    %93 = vmatpush1.bf16.msra.mxu0 %v83
    %94 = vmatprep.subr.bf16.mxu0 0
    %95 = vmatpush1.bf16.msra.mxu0 0
    %96 = vmatprep.subr.bf16.mxu0 0
    %97 = vmatpush1.bf16.msra.mxu0 0
    %98 = vmatprep.subr.bf16.mxu0 0
    %99 = vmatpush1.bf16.msra.mxu0 0
    %100 = vmatprep.subr.bf16.mxu0 0
    %101 = vmatpush1.bf16.msra.mxu0 0
    %102 = vmatprep.subr.bf16.mxu0 0
    %103 = vmatpush1.bf16.msra.mxu0 0
    %104 = vmatprep.subr.bf16.mxu0 0
    %105 = vmatpush1.bf16.msra.mxu0 0
    %106 = vmatprep.subr.bf16.mxu0 0
    %107 = vmatpush1.bf16.msra.mxu0 0
    %108 = vmatprep.subr.bf16.mxu0 0
    %109 = vmatpush1.bf16.msra.mxu0 0
    %110 = vmatprep.subr.bf16.mxu0 0
    %111 = vmatpush1.bf16.msra.mxu0 0
    %112 = vmatprep.subr.bf16.mxu0 0
    %113 = vmatpush1.bf16.msra.mxu0 0
    %114 = vmatprep.subr.bf16.mxu0 0
    %115 = vmatpush1.bf16.msra.mxu0 0
    %116 = vmatprep.subr.bf16.mxu0 0
    %117 = vmatpush1.bf16.msra.mxu0 0
    %118 = vmatprep.subr.bf16.mxu0 0
    %119 = vmatpush1.bf16.msra.mxu0 0
    %120 = vmatprep.subr.bf16.mxu0 0
    %121 = vmatpush1.bf16.msra.mxu0 0
    %122 = vmatprep.mubr.bf16.mxu0 0
    %123 = vmatmul.mubr.bf16.gmra.mrb[0].mxu0 %v88
    %v124 = vpop.f32.mrb[0].mxu0
    %v125 = vadd.f32 %v72, %v124
    %v126 = vpop.f32.mrb[0].mxu0
    %v127 = vpop.f32.mrb[0].mxu0
    %v128 = vpop.f32.mrb[0].mxu0
    %129 = vdwg.mxu0
    %v130 = vmul.f32 %v125, 0.01
    %v131 = vmax.f32 %v125, %v130
    %v132 = vpack.c.bf16 %v131, %v131
    %v133 = vld [vmem:[%s3] sm:$0xf]
    %v134 = vld [vmem:[%s3 + $0x4] sm:$0xf]
    %v135 = vld [vmem:[%s3 + $0x8] sm:$0xf]
    %v136 = vld [vmem:[%s3 + $0xc] sm:$0xf]
    %v137 = vld [vmem:[%s3 + $0x10] sm:$0xf]
    %v138 = vld [vmem:[%s3 + $0x14] sm:$0xf]
    %v139 = vld [vmem:[%s3 + $0x18] sm:$0xf]
    %v140 = vld [vmem:[%s3 + $0x1c] sm:$0xf]
    %v141 = vld [vmem:[%s3 + $0x20] sm:$0xf]
    %v142 = vld [vmem:[%s3 + $0x24] sm:$0xf]
    %v143 = vld [vmem:[%s3 + $0x28] sm:$0xf]
    %v144 = vld [vmem:[%s3 + $0x2c] sm:$0xf]
    %v145 = vld [vmem:[%s3 + $0x30] sm:$0xf]
    %v146 = vld [vmem:[%s3 + $0x34] sm:$0xf]
    %v147 = vld [vmem:[%s3 + $0x38] sm:$0xf]
    %v148 = vld [vmem:[%s3 + $0x3c] sm:$0xf]
    %v149 = vld [vmem:[%s4] sm:$0x1]
    %v151 = vlaneseq
    %v152 = vshrl.u32 %v151, 7
    %v153 = vsub.s32 0, %v152
    %v154 = vrot.slane %v149, %v153
    %v172 = vunpack.c.l.b16 %v133
    %v173 = vunpack.c.l.b16 %v134
    %v174 = vunpack.c.l.b16 %v135
    %v175 = vunpack.c.l.b16 %v136
    %v176 = vunpack.c.l.b16 %v137
    %v177 = vunpack.c.l.b16 %v138
    %v178 = vunpack.c.l.b16 %v139
    %v179 = vunpack.c.l.b16 %v140
    %v180 = vunpack.c.l.b16 %v141
    %v181 = vunpack.c.l.b16 %v142
    %v182 = vunpack.c.l.b16 %v143
    %v183 = vunpack.c.l.b16 %v144
    %v184 = vunpack.c.l.b16 %v145
    %v185 = vunpack.c.l.b16 %v146
    %v186 = vunpack.c.l.b16 %v147
    %v187 = vunpack.c.l.b16 %v148
    %v188 = vpack.c.b16 %v173, %v172
    %v189 = vpack.c.b16 %v175, %v174
    %v190 = vpack.c.b16 %v177, %v176
    %v191 = vpack.c.b16 %v179, %v178
    %v192 = vpack.c.b16 %v181, %v180
    %v193 = vpack.c.b16 %v183, %v182
    %v194 = vpack.c.b16 %v185, %v184
    %v195 = vpack.c.b16 %v187, %v186
    %204 = vmatprep.subr.bf16.mxu0 0
    %205 = vmatpush1.bf16.msra.mxu0 %v188
    %206 = vmatprep.subr.bf16.mxu0 0
    %207 = vmatpush1.bf16.msra.mxu0 %v189
    %208 = vmatprep.subr.bf16.mxu0 0
    %209 = vmatpush1.bf16.msra.mxu0 %v190
    %210 = vmatprep.subr.bf16.mxu0 0
    %211 = vmatpush1.bf16.msra.mxu0 %v191
    %212 = vmatprep.subr.bf16.mxu0 0
    %213 = vmatpush1.bf16.msra.mxu0 %v192
    %214 = vmatprep.subr.bf16.mxu0 0
    %215 = vmatpush1.bf16.msra.mxu0 %v193
    %216 = vmatprep.subr.bf16.mxu0 0
    %217 = vmatpush1.bf16.msra.mxu0 %v194
    %218 = vmatprep.subr.bf16.mxu0 0
    %219 = vmatpush1.bf16.msra.mxu0 %v195
    %220 = vmatprep.subr.bf16.mxu0 0
    %221 = vmatpush1.bf16.msra.mxu0 0
    %222 = vmatprep.subr.bf16.mxu0 0
    %223 = vmatpush1.bf16.msra.mxu0 0
    %224 = vmatprep.subr.bf16.mxu0 0
    %225 = vmatpush1.bf16.msra.mxu0 0
    %226 = vmatprep.subr.bf16.mxu0 0
    %227 = vmatpush1.bf16.msra.mxu0 0
    %228 = vmatprep.subr.bf16.mxu0 0
    %229 = vmatpush1.bf16.msra.mxu0 0
    %230 = vmatprep.subr.bf16.mxu0 0
    %231 = vmatpush1.bf16.msra.mxu0 0
    %232 = vmatprep.subr.bf16.mxu0 0
    %233 = vmatpush1.bf16.msra.mxu0 0
    %234 = vmatprep.subr.bf16.mxu0 0
    %235 = vmatpush1.bf16.msra.mxu0 0
    %236 = vmatprep.mubr.bf16.mxu0 0
    %237 = vmatmul.mubr.bf16.gmra.mrb[0].mxu0 %v132
    %v238 = vpop.f32.mrb[0].mxu0
    %v239 = vadd.f32 %v154, %v238
    %v240 = vpop.f32.mrb[0].mxu0
    %v241 = vpop.f32.mrb[0].mxu0
    %v242 = vpop.f32.mrb[0].mxu0
    %243 = vdwg.mxu0
    %v244 = vmul.f32 %v239, 0.01
    %v245 = vmax.f32 %v239, %v244
    %v246 = vpack.c.bf16 %v245, %v245
    %v247 = vld [vmem:[#allocation4] sm:$0xf]
    %v248 = vld [vmem:[#allocation4 + $0x4] sm:$0xf]
    %v249 = vld [vmem:[#allocation4 + $0x8] sm:$0xf]
    %v250 = vld [vmem:[#allocation4 + $0xc] sm:$0xf]
    %v251 = vld [vmem:[#allocation4 + $0x10] sm:$0xf]
    %v252 = vld [vmem:[#allocation4 + $0x14] sm:$0xf]
    %v253 = vld [vmem:[#allocation4 + $0x18] sm:$0xf]
    %v254 = vld [vmem:[#allocation4 + $0x1c] sm:$0xf]
    %v255 = vld [vmem:[#allocation4 + $0x20] sm:$0xf]
    %v256 = vld [vmem:[#allocation4 + $0x24] sm:$0xf]
    %v257 = vld [vmem:[#allocation4 + $0x28] sm:$0xf]
    %v258 = vld [vmem:[#allocation4 + $0x2c] sm:$0xf]
    %v259 = vld [vmem:[#allocation4 + $0x30] sm:$0xf]
    %v260 = vld [vmem:[#allocation4 + $0x34] sm:$0xf]
    %v261 = vld [vmem:[#allocation4 + $0x38] sm:$0xf]
    %v262 = vld [vmem:[#allocation4 + $0x3c] sm:$0xf]
    %v263 = vld [vmem:[%s6] sm:$0x1]
    %v265 = vlaneseq
    %v266 = vshrl.u32 %v265, 7
    %v267 = vsub.s32 0, %v266
    %v268 = vrot.slane %v263, %v267
    %v286 = vunpack.c.l.b16 %v247
    %v287 = vunpack.c.l.b16 %v248
    %v288 = vunpack.c.l.b16 %v249
    %v289 = vunpack.c.l.b16 %v250
    %v290 = vunpack.c.l.b16 %v251
    %v291 = vunpack.c.l.b16 %v252
    %v292 = vunpack.c.l.b16 %v253
    %v293 = vunpack.c.l.b16 %v254
    %v294 = vunpack.c.l.b16 %v255
    %v295 = vunpack.c.l.b16 %v256
    %v296 = vunpack.c.l.b16 %v257
    %v297 = vunpack.c.l.b16 %v258
    %v298 = vunpack.c.l.b16 %v259
    %v299 = vunpack.c.l.b16 %v260
    %v300 = vunpack.c.l.b16 %v261
    %v301 = vunpack.c.l.b16 %v262
    %v302 = vpack.c.b16 %v287, %v286
    %v303 = vpack.c.b16 %v289, %v288
    %v304 = vpack.c.b16 %v291, %v290
    %v305 = vpack.c.b16 %v293, %v292
    %v306 = vpack.c.b16 %v295, %v294
    %v307 = vpack.c.b16 %v297, %v296
    %v308 = vpack.c.b16 %v299, %v298
    %v309 = vpack.c.b16 %v301, %v300
    %318 = vmatprep.subr.bf16.mxu0 0
    %319 = vmatpush1.bf16.msra.mxu0 %v302
    %320 = vmatprep.subr.bf16.mxu0 0
    %321 = vmatpush1.bf16.msra.mxu0 %v303
    %322 = vmatprep.subr.bf16.mxu0 0
    %323 = vmatpush1.bf16.msra.mxu0 %v304
    %324 = vmatprep.subr.bf16.mxu0 0
    %325 = vmatpush1.bf16.msra.mxu0 %v305
    %326 = vmatprep.subr.bf16.mxu0 0
    %327 = vmatpush1.bf16.msra.mxu0 %v306
    %328 = vmatprep.subr.bf16.mxu0 0
    %329 = vmatpush1.bf16.msra.mxu0 %v307
    %330 = vmatprep.subr.bf16.mxu0 0
    %331 = vmatpush1.bf16.msra.mxu0 %v308
    %332 = vmatprep.subr.bf16.mxu0 0
    %333 = vmatpush1.bf16.msra.mxu0 %v309
    %334 = vmatprep.subr.bf16.mxu0 0
    %335 = vmatpush1.bf16.msra.mxu0 0
    %336 = vmatprep.subr.bf16.mxu0 0
    %337 = vmatpush1.bf16.msra.mxu0 0
    %338 = vmatprep.subr.bf16.mxu0 0
    %339 = vmatpush1.bf16.msra.mxu0 0
    %340 = vmatprep.subr.bf16.mxu0 0
    %341 = vmatpush1.bf16.msra.mxu0 0
    %342 = vmatprep.subr.bf16.mxu0 0
    %343 = vmatpush1.bf16.msra.mxu0 0
    %344 = vmatprep.subr.bf16.mxu0 0
    %345 = vmatpush1.bf16.msra.mxu0 0
    %346 = vmatprep.subr.bf16.mxu0 0
    %347 = vmatpush1.bf16.msra.mxu0 0
    %348 = vmatprep.subr.bf16.mxu0 0
    %349 = vmatpush1.bf16.msra.mxu0 0
    %350 = vmatprep.mubr.bf16.mxu0 0
    %351 = vmatmul.mubr.bf16.gmra.mrb[0].mxu0 %v246
    %v352 = vpop.f32.mrb[0].mxu0
    %v353 = vadd.f32 %v268, %v352
    %v354 = vpop.f32.mrb[0].mxu0
    %v355 = vpop.f32.mrb[0].mxu0
    %v356 = vpop.f32.mrb[0].mxu0
    %357 = vdwg.mxu0
    %v358 = vmul.f32 %v353, 0.01
    %v359 = vmax.f32 %v353, %v358
    %v360 = vpack.c.bf16 %v359, %v359
    %v361 = vld [vmem:[%s7] sm:$0xf]
    %v362 = vld [vmem:[%s7 + $0x4] sm:$0xf]
    %v363 = vld [vmem:[%s7 + $0x8] sm:$0xf]
    %v364 = vld [vmem:[%s7 + $0xc] sm:$0xf]
    %v365 = vld [vmem:[%s7 + $0x10] sm:$0xf]
    %v366 = vld [vmem:[%s7 + $0x14] sm:$0xf]
    %v367 = vld [vmem:[%s7 + $0x18] sm:$0xf]
    %v368 = vld [vmem:[%s7 + $0x1c] sm:$0xf]
    %v369 = vld [vmem:[%s7 + $0x20] sm:$0xf]
    %v370 = vld [vmem:[%s7 + $0x24] sm:$0xf]
    %v371 = vld [vmem:[%s7 + $0x28] sm:$0xf]
    %v372 = vld [vmem:[%s7 + $0x2c] sm:$0xf]
    %v373 = vld [vmem:[%s7 + $0x30] sm:$0xf]
    %v374 = vld [vmem:[%s7 + $0x34] sm:$0xf]
    %v375 = vld [vmem:[%s7 + $0x38] sm:$0xf]
    %v376 = vld [vmem:[%s7 + $0x3c] sm:$0xf]
    %v377 = vld [vmem:[%s8] sm:$0x1]
    %v379 = vlaneseq
    %v380 = vshrl.u32 %v379, 7
    %v381 = vsub.s32 0, %v380
    %v382 = vrot.slane %v377, %v381
    %v400 = vunpack.c.l.b16 %v361
    %v401 = vunpack.c.l.b16 %v362
    %v402 = vunpack.c.l.b16 %v363
    %v403 = vunpack.c.l.b16 %v364
    %v404 = vunpack.c.l.b16 %v365
    %v405 = vunpack.c.l.b16 %v366
    %v406 = vunpack.c.l.b16 %v367
    %v407 = vunpack.c.l.b16 %v368
    %v408 = vunpack.c.l.b16 %v369
    %v409 = vunpack.c.l.b16 %v370
    %v410 = vunpack.c.l.b16 %v371
    %v411 = vunpack.c.l.b16 %v372
    %v412 = vunpack.c.l.b16 %v373
    %v413 = vunpack.c.l.b16 %v374
    %v414 = vunpack.c.l.b16 %v375
    %v415 = vunpack.c.l.b16 %v376
    %v416 = vpack.c.b16 %v401, %v400
    %v417 = vpack.c.b16 %v403, %v402
    %v418 = vpack.c.b16 %v405, %v404
    %v419 = vpack.c.b16 %v407, %v406
    %v420 = vpack.c.b16 %v409, %v408
    %v421 = vpack.c.b16 %v411, %v410
    %v422 = vpack.c.b16 %v413, %v412
    %v423 = vpack.c.b16 %v415, %v414
    %432 = vmatprep.subr.bf16.mxu0 0
    %433 = vmatpush1.bf16.msra.mxu0 %v416
    %434 = vmatprep.subr.bf16.mxu0 0
    %435 = vmatpush1.bf16.msra.mxu0 %v417
    %436 = vmatprep.subr.bf16.mxu0 0
    %437 = vmatpush1.bf16.msra.mxu0 %v418
    %438 = vmatprep.subr.bf16.mxu0 0
    %439 = vmatpush1.bf16.msra.mxu0 %v419
    %440 = vmatprep.subr.bf16.mxu0 0
    %441 = vmatpush1.bf16.msra.mxu0 %v420
    %442 = vmatprep.subr.bf16.mxu0 0
    %443 = vmatpush1.bf16.msra.mxu0 %v421
    %444 = vmatprep.subr.bf16.mxu0 0
    %445 = vmatpush1.bf16.msra.mxu0 %v422
    %446 = vmatprep.subr.bf16.mxu0 0
    %447 = vmatpush1.bf16.msra.mxu0 %v423
    %448 = vmatprep.subr.bf16.mxu0 0
    %449 = vmatpush1.bf16.msra.mxu0 0
    %450 = vmatprep.subr.bf16.mxu0 0
    %451 = vmatpush1.bf16.msra.mxu0 0
    %452 = vmatprep.subr.bf16.mxu0 0
    %453 = vmatpush1.bf16.msra.mxu0 0
    %454 = vmatprep.subr.bf16.mxu0 0
    %455 = vmatpush1.bf16.msra.mxu0 0
    %456 = vmatprep.subr.bf16.mxu0 0
    %457 = vmatpush1.bf16.msra.mxu0 0
    %458 = vmatprep.subr.bf16.mxu0 0
    %459 = vmatpush1.bf16.msra.mxu0 0
    %460 = vmatprep.subr.bf16.mxu0 0
    %461 = vmatpush1.bf16.msra.mxu0 0
    %462 = vmatprep.subr.bf16.mxu0 0
    %463 = vmatpush1.bf16.msra.mxu0 0
    %464 = vmatprep.mubr.bf16.mxu0 0
    %465 = vmatmul.mubr.bf16.gmra.mrb[0].mxu0 %v360
    %v466 = vpop.f32.mrb[0].mxu0
    %v467 = vadd.f32 %v382, %v466
    %v468 = vpop.f32.mrb[0].mxu0
    %v469 = vpop.f32.mrb[0].mxu0
    %v470 = vpop.f32.mrb[0].mxu0
    %471 = vdwg.mxu0
    %vm472 = vcmask 15360
    %473 = vst.msk [vmem:[%s9] sm:$0xff] %vm472, %v467
    // Predicated region
    $region46: #{tpu_custom_call.1} parent=1 // pred_check
      _
    $region47: #{tpu_custom_call.1} parent=1 // pred_check_branch
      %475 = sbr.rel (0) target = $region49
    $region48: #{tpu_custom_call.1} parent=1 // pred_region
      _
    $region49: #{tpu_custom_call.1} parent=1 // pred_fallthru
      _
    // Predicated region
    $region50: #{tpu_custom_call.1} parent=1 // pred_check
      _
    $region51: #{tpu_custom_call.1} parent=1 // pred_check_branch
      %477 = sbr.rel (0) target = $region53
    $region52: #{tpu_custom_call.1} parent=1 // pred_region
      _
    $region53: #{tpu_custom_call.1} parent=1 // pred_fallthru
      _
    %478 = vsyncpa [#allocation3], 1
    %479 = vsyncpa [#allocation5], 1

</llo_original>
